<compile_context>
chip_gen: v6e
topology: v6e:2x2x1
jax: 0.10.0
libtpu: 0.0.40
codegen_flags: <defaults>
</compile_context>

<pallas_src>
import functools

import jax
import jax.numpy as jnp
from jax.experimental import pallas as pl
from jax.experimental.pallas import tpu as pltpu

_SUBLANE = 8


def _round_up(a: int, b: int) -> int:
    return (a + b - 1) // b * b


def _downpool_kernel(x_ref, w_ref, b_ref, o_ref, *, compute_dtype):
    # x_ref: (TM, K)  streamed token tile (f32 in HBM/DMA)
    # w_ref: (K, N)   resident weight (pre-transposed once in the wrapper)
    # b_ref: (1, N)   resident bias (f32)
    # o_ref: (TM, N)  output tile
    x = x_ref[...]
    if compute_dtype is not None:
        x = x.astype(compute_dtype)          # in-kernel cast: no extra HBM pass
    acc = jnp.dot(x, w_ref[...], preferred_element_type=jnp.float32)
    o_ref[...] = (acc + b_ref[...]).astype(o_ref.dtype)   # f32 epilogue, cast on store


def _pick_tm(m_rows: int, k: int, n: int, in_itemsize: int, out_itemsize: int,
             tile_budget_bytes: int, *, min_tile: int = 256,
             target_steps: int = 8) -> int:
    """Row-tile size. Rules:
       - small problems: one full-extent tile (block dim == array dim is legal),
       - otherwise: largest power-of-two tile fitting the double-buffer budget,
         shrunk (floor `min_tile`) until the grid has >= target_steps steps so
         the pipeline + megacore split actually engage."""
    def tile_bytes(tm):
        return 2 * tm * (k * in_itemsize + n * out_itemsize)

    if m_rows <= min_tile and tile_bytes(m_rows) <= tile_budget_bytes:
        return m_rows

    tm = 1024
    while tm > _SUBLANE and tile_bytes(tm) > tile_budget_bytes:
        tm //= 2
    while tm > min_tile and pl.cdiv(m_rows, tm) < target_steps:
        tm //= 2
    if tm >= m_rows:
        return m_rows                 # single full-extent tile
    return max(_SUBLANE, tm)          # power-of-two, multiple of 8


@functools.partial(jax.jit,
                   static_argnames=("pooling_factor", "compute_dtype", "out_dtype"))
def downpool_forward(x, weight, bias, *, pooling_factor,
                     compute_dtype=None, out_dtype=None):
    """x: (B, T, H); weight: (H*q, H*p) [PyTorch nn.Linear layout]; bias: (H*q,)."""
    B, T, H = x.shape
    p = pooling_factor
    if T % p != 0:
        raise ValueError("T must be divisible by pooling_factor")
    K = H * p
    N = weight.shape[0]
    M = B * (T // p)
    out_dtype = x.dtype if out_dtype is None else out_dtype

    # ---- Glue (pure layout / tiny one-time ops, stays in JAX) ----
    x2d = x.reshape(M, K)                                  # free row-major regroup
    w = weight.T                                           # one-time (K, N): N*K*4 bytes
    if compute_dtype is not None:
        w = w.astype(compute_dtype)                        # tiny, one-time
    b2d = bias.reshape(1, N).astype(jnp.float32)

    in_itemsize = jnp.dtype(x2d.dtype).itemsize
    out_itemsize = jnp.dtype(out_dtype).itemsize
    w_itemsize = jnp.dtype(w.dtype).itemsize

    # Resident weight/bias are still double-buffered by the BlockSpec pipeline
    # (constant index_map avoids re-DMA, not the 2x allocation).
    resident_bytes = 2 * (K * N * w_itemsize + N * 4)

    # Tile budget: conservative enough for v7x's 64 MiB VMEM; leave room for
    # the resident weight.
    tile_budget = max(4 << 20, (24 << 20) - resident_bytes)
    TM = _pick_tm(M, K, N, in_itemsize, out_itemsize, tile_budget)
    grid = (pl.cdiv(M, TM),)                               # no jnp.pad of x along M

    tile_bytes = 2 * TM * (K * in_itemsize + N * out_itemsize)
    vmem_limit = int(min(48 << 20,                         # headroom below v7x's 64 MiB
                         max(2 * (tile_bytes + resident_bytes), 16 << 20)))

    cost = pl.CostEstimate(
        flops=2 * M * K * N,
        transcendentals=0,
        bytes_accessed=(x2d.size * in_itemsize + w.size * w_itemsize
                        + b2d.size * 4 + M * N * out_itemsize))

    kernel = functools.partial(_downpool_kernel, compute_dtype=compute_dtype)

    out2d = pl.pallas_call(
        kernel,
        out_shape=jax.ShapeDtypeStruct((M, N), out_dtype),
        grid_spec=pltpu.PrefetchScalarGridSpec(
            num_scalar_prefetch=0,
            grid=grid,
            in_specs=[
                pl.BlockSpec((TM, K), lambda i: (i, 0)),   # streamed x tiles
                pl.BlockSpec((K, N), lambda i: (0, 0)),    # resident weight (K, N)
                pl.BlockSpec((1, N), lambda i: (0, 0)),    # resident bias
            ],
            out_specs=pl.BlockSpec((TM, N), lambda i: (i, 0)),
        ),
        compiler_params=pltpu.CompilerParams(
            dimension_semantics=("parallel",),             # M tiles independent
            vmem_limit_bytes=vmem_limit),
        cost_estimate=cost,
    )(x2d, w, b2d)

    return out2d.reshape(B, T // p, N)                     # free reshape (no data move)


if __name__ == "__main__":
    # Module hyperparameters (small, consistent with the PyTorch module).
    signal_dim = 4        # H
    pooling_factor = 4    # p
    expansion_factor = 2  # q
    B, T, H = 2, 16, signal_dim

    key = jax.random.PRNGKey(0)
    kx, kw, kb, kx2, kw2, kb2 = jax.random.split(key, 6)

    # nn.Linear(H*p, H*q) init: weight (H*q, H*p), bias (H*q,)
    in_features = signal_dim * pooling_factor
    out_features = signal_dim * expansion_factor
    bound = 1.0 / (in_features ** 0.5)
    weight = jax.random.uniform(kw, (out_features, in_features),
                                minval=-bound, maxval=bound, dtype=jnp.float32)
    bias = jax.random.uniform(kb, (out_features,),
                              minval=-bound, maxval=bound, dtype=jnp.float32)
    x = jax.random.normal(kx, (B, T, H), dtype=jnp.float32)

    # --- f32 path (validation) ---
    out = downpool_forward(x, weight, bias, pooling_factor=pooling_factor)
    jax.block_until_ready(out)
    ref = jnp.matmul(x.reshape(-1, T // pooling_factor, in_features), weight.T,
                     precision=jax.lax.Precision.HIGHEST) + bias
    assert out.shape == (B, T // pooling_factor, out_features)
    assert jnp.allclose(out, ref, atol=1e-5, rtol=1e-5)

    # --- bf16-MXU path (in-kernel cast; f32 accumulation; looser tolerance) ---
    out_bf16mxu = downpool_forward(x, weight, bias, pooling_factor=pooling_factor,
                                   compute_dtype=jnp.bfloat16)
    jax.block_until_ready(out_bf16mxu)
    assert jnp.allclose(out_bf16mxu, ref, atol=5e-2, rtol=5e-2)

    # --- Larger shape exercising the multi-step pipelined grid (TM=256, 8 steps) ---
    B2, T2, H2 = 4, 2048, 32
    in2, out2_feat = H2 * pooling_factor, H2 * expansion_factor
    bound2 = 1.0 / (in2 ** 0.5)
    w2 = jax.random.uniform(kw2, (out2_feat, in2), minval=-bound2, maxval=bound2,
                            dtype=jnp.float32)
    b2 = jax.random.uniform(kb2, (out2_feat,), minval=-bound2, maxval=bound2,
                            dtype=jnp.float32)
    x2 = jax.random.normal(kx2, (B2, T2, H2), dtype=jnp.float32)
    o2 = downpool_forward(x2, w2, b2, pooling_factor=pooling_factor)
    jax.block_until_ready(o2)
    ref2 = jnp.matmul(x2.reshape(-1, T2 // pooling_factor, in2), w2.T,
                      precision=jax.lax.Precision.HIGHEST) + b2
    assert o2.shape == (B2, T2 // pooling_factor, out2_feat)
    assert jnp.allclose(o2, ref2, atol=1e-4, rtol=1e-4)

    # --- bf16 output option (halves output HBM writes when downstream allows) ---
    o2_bf16 = downpool_forward(x2, w2, b2, pooling_factor=pooling_factor,
                               out_dtype=jnp.bfloat16)
    jax.block_until_ready(o2_bf16)
    assert o2_bf16.dtype == jnp.bfloat16
    assert jnp.allclose(o2_bf16.astype(jnp.float32), ref2, atol=3e-2, rtol=3e-2)

    print("KERNEL_OK")
</pallas_src>

<mosaic_0001>
module attributes {stable_mosaic.version = 11 : i64} {
  func.func @_downpool_kernel(%arg0: i32, %arg1: memref<8x16xf32, #tpu.memory_space<vmem>>, %arg2: memref<16x8xf32, #tpu.memory_space<vmem>>, %arg3: memref<1x8xf32, #tpu.memory_space<vmem>>, %arg4: memref<8x8xf32, #tpu.memory_space<vmem>>) attributes {dimension_semantics = [#tpu.dimension_semantics<parallel>], iteration_bounds = array<i64: 1>, scalar_prefetch = 0 : i64, scratch_operands = 0 : i64, tpu.core_type = #tpu.core_type<tc>, window_params = [{transform_indices = @transform_0, window_bounds = array<i64: 8, 16>}, {pipeline_mode = #tpu.pipeline_mode<synchronous>, transform_indices = @transform_1, window_bounds = array<i64: 16, 8>}, {pipeline_mode = #tpu.pipeline_mode<synchronous>, transform_indices = @transform_2, window_bounds = array<i64: 1, 8>}, {transform_indices = @transform_3, window_bounds = array<i64: 8, 8>}]} {
    %c0 = arith.constant 0 : index
    %c0_0 = arith.constant 0 : index
    %0 = vector.load %arg1[%c0, %c0_0] : memref<8x16xf32, #tpu.memory_space<vmem>>, vector<8x16xf32>
    %c0_1 = arith.constant 0 : index
    %c0_2 = arith.constant 0 : index
    %1 = vector.load %arg2[%c0_1, %c0_2] : memref<16x8xf32, #tpu.memory_space<vmem>>, vector<16x8xf32>
    %cst = arith.constant dense<0.000000e+00> : vector<8x8xf32>
    %2 = tpu.matmul %0, %1, %cst {dimension_numbers = #tpu.dot_dimension_numbers<[1], [0], [0], [1], [0, 0, 1, 1], [], []>} : vector<8x16xf32>, vector<16x8xf32>, vector<8x8xf32> -> vector<8x8xf32>
    %c0_3 = arith.constant 0 : index
    %c0_4 = arith.constant 0 : index
    %3 = vector.load %arg3[%c0_3, %c0_4] : memref<1x8xf32, #tpu.memory_space<vmem>>, vector<1x8xf32>
    %4 = vector.broadcast %3 : vector<1x8xf32> to vector<8x8xf32>
    %5 = arith.addf %2, %4 : vector<8x8xf32>
    %c0_5 = arith.constant 0 : index
    %c0_6 = arith.constant 0 : index
    %6 = vector.load %arg4[%c0_5, %c0_6] : memref<8x8xf32, #tpu.memory_space<vmem>>, vector<8x8xf32>
    tpu.vector_store %arg4[%c0_5, %c0_6], %5 {strides = array<i32>} : memref<8x8xf32, #tpu.memory_space<vmem>>, vector<8x8xf32>,
    return
  }
  func.func @transform_0(%arg0: i32) -> (i32, i32) {
    %c0_i32 = arith.constant 0 : i32
    %c0_i32_0 = arith.constant 0 : i32
    return %arg0, %c0_i32 : i32, i32
  }
  func.func @transform_1(%arg0: i32) -> (i32, i32) {
    %c0_i32 = arith.constant 0 : i32
    %c0_i32_0 = arith.constant 0 : i32
    %c0_i32_1 = arith.constant 0 : i32
    return %c0_i32, %c0_i32_0 : i32, i32
  }
  func.func @transform_2(%arg0: i32) -> (i32, i32) {
    %c0_i32 = arith.constant 0 : i32
    %c0_i32_0 = arith.constant 0 : i32
    %c0_i32_1 = arith.constant 0 : i32
    return %c0_i32, %c0_i32_0 : i32, i32
  }
  func.func @transform_3(%arg0: i32) -> (i32, i32) {
    %c0_i32 = arith.constant 0 : i32
    %c0_i32_0 = arith.constant 0 : i32
    return %arg0, %c0_i32 : i32, i32
  }
}

</mosaic_0001>

<llo_original>
// kernel: downpool_forward.1
$region0: #{downpool_forward.1}
  #allocation0 [shape = 'u32[]', space=smem, size = 0x4, offset = 0x4, fixed_abs, tag = 'smem constant byte address 0x4 - core index']
  #allocation1 [shape = 'u32[144,128]{1,0:T(1,128)}', space=vmem, size = 0x12000, scoped, tag = 'internal scratch']
  %s0 = inlined_call_operand.vmem [shape: f32[8,16], index: 0, kind: input, shape index: {}]
  %s1 = inlined_call_operand.vmem [shape: f32[16,8], index: 1, kind: input, shape index: {}]
  %s2 = inlined_call_operand.vmem [shape: f32[1,8], index: 2, kind: input, shape index: {}]
  %s3 = inlined_call_operand.hbm [shape: f32[8,8], index: 3, kind: output, shape index: {}]
  %s4 = sld [smem:[#allocation0]]
  $region22: #{downpool_forward.1} parent=0
    _
  %s6 = ssub.s32 1, %s4
  %s7 = scalar_select 0, %s6, %s4
  $region1: #{downpool_forward.1} parent=0
    #allocation2 [shape = 'u8[4096]{0}', space=vmem, size = 0x1000, scoped, tag = 'output window, operand 0, single buffered']
    #allocation3 [shape = 's32[1]{0}', space=sflag, size = 0x4, scoped, tag = 'scoped memory for downpool_forward.1']
    %8 = vsyncpa [#allocation3], 0
    // Predicated region
    $region2: #{downpool_forward.1} parent=1 // pred_check
      _
    $region3: #{downpool_forward.1} parent=1 // pred_check_branch
      %10 = sbr.rel (0) target = $region5
    $region4: #{downpool_forward.1} parent=1 // pred_region
      _
    $region5: #{downpool_forward.1} parent=1 // pred_fallthru
      _
    // Predicated region
    $region6: #{downpool_forward.1} parent=1 // pred_check
      _
    $region7: #{downpool_forward.1} parent=1 // pred_check_branch
      %12 = sbr.rel (0) target = $region9
    $region8: #{downpool_forward.1} parent=1 // pred_region
      _
    $region9: #{downpool_forward.1} parent=1 // pred_fallthru
      _
    // Predicated region
    $region10: #{downpool_forward.1} parent=1 // pred_check
      _
    $region11: #{downpool_forward.1} parent=1 // pred_check_branch
      %14 = sbr.rel (0) target = $region13
    $region12: #{downpool_forward.1} parent=1 // pred_region
      _
    $region13: #{downpool_forward.1} parent=1 // pred_fallthru
      _
    %v15 = vld [vmem:[%s0] sm:$0xff]
    %v16 = vld [vmem:[%s1] sm:$0xff]
    %v17 = vld [vmem:[%s1 + $0x8] sm:$0xff]
    %v18 = vld [vmem:[%s2] sm:$0x1]
    %v20 = vlaneseq
    %v21 = vshrl.u32 %v20, 7
    %v22 = vsub.s32 0, %v21
    %v23 = vrot.slane %v18, %v22
    %vm25 = vcmask 130048
    %v27 = vsel %vm25, %v15, 0
    %29 = vmatprep.subr.mxu0 0.0
    %30 = vmatpush1.msra.mxu0 0.0
    %31 = vmatprep.subr.mxu0 0.0
    %32 = vmatpush1.msra.mxu0 0.0
    %33 = vmatprep.subr.mxu0 0.0
    %34 = vmatpush1.msra.mxu0 0.0
    %35 = vmatprep.subr.mxu0 0.0
    %36 = vmatpush1.msra.mxu0 0.0
    %37 = vmatprep.subr.mxu0 0.0
    %38 = vmatpush1.msra.mxu0 0.0
    %39 = vmatprep.subr.mxu0 0.0
    %40 = vmatpush1.msra.mxu0 0.0
    %41 = vmatprep.subr.mxu0 0.0
    %42 = vmatpush1.msra.mxu0 0.0
    %43 = vmatprep.subr.mxu0 0.0
    %44 = vmatpush1.msra.mxu0 0.0
    %45 = vmatprep.subr.mxu0 0.0
    %46 = vmatpush1.msra.mxu0 0.0
    %47 = vmatprep.subr.mxu0 0.0
    %48 = vmatpush1.msra.mxu0 0.0
    %49 = vmatprep.subr.mxu0 0.0
    %50 = vmatpush1.msra.mxu0 0.0
    %51 = vmatprep.subr.mxu0 0.0
    %52 = vmatpush1.msra.mxu0 0.0
    %53 = vmatprep.subr.mxu0 0.0
    %54 = vmatpush1.msra.mxu0 0.0
    %55 = vmatprep.subr.mxu0 0.0
    %56 = vmatpush1.msra.mxu0 0.0
    %57 = vmatprep.subr.mxu0 0.0
    %58 = vmatpush1.msra.mxu0 %v17
    %59 = vmatprep.subr.mxu0 0.0
    %60 = vmatpush1.msra.mxu0 %v16
    %61 = vmatprep.subr.mxu0 0.0
    %62 = vmatpush2.msra.mxu0 0.0
    %63 = vmatprep.subr.mxu0 0.0
    %64 = vmatpush2.msra.mxu0 0.0
    %65 = vmatprep.subr.mxu0 0.0
    %66 = vmatpush2.msra.mxu0 0.0
    %67 = vmatprep.subr.mxu0 0.0
    %68 = vmatpush2.msra.mxu0 0.0
    %69 = vmatprep.subr.mxu0 0.0
    %70 = vmatpush2.msra.mxu0 0.0
    %71 = vmatprep.subr.mxu0 0.0
    %72 = vmatpush2.msra.mxu0 0.0
    %73 = vmatprep.subr.mxu0 0.0
    %74 = vmatpush2.msra.mxu0 0.0
    %75 = vmatprep.subr.mxu0 0.0
    %76 = vmatpush2.msra.mxu0 0.0
    %77 = vmatprep.subr.mxu0 0.0
    %78 = vmatpush2.msra.mxu0 0.0
    %79 = vmatprep.subr.mxu0 0.0
    %80 = vmatpush2.msra.mxu0 0.0
    %81 = vmatprep.subr.mxu0 0.0
    %82 = vmatpush2.msra.mxu0 0.0
    %83 = vmatprep.subr.mxu0 0.0
    %84 = vmatpush2.msra.mxu0 0.0
    %85 = vmatprep.subr.mxu0 0.0
    %86 = vmatpush2.msra.mxu0 0.0
    %87 = vmatprep.subr.mxu0 0.0
    %88 = vmatpush2.msra.mxu0 0.0
    %89 = vmatprep.subr.mxu0 0.0
    %90 = vmatpush2.msra.mxu0 0.0
    %91 = vmatprep.subr.mxu0 0.0
    %92 = vmatpush2.msra.mxu0 0.0
    %93 = vmatprep.mubr.f32.mxu0 0.0
    %94 = vmatmul.mubr.f32.gmra.mxu0 %v27
    %v95 = vpop.f32.mrf.mxu0
    %v96 = vadd.f32 %v23, %v95
    %v97 = vpop.f32.mrf.mxu0
    %98 = vdwg.mxu0
    %vm99 = vcmask 64512
    %100 = vst.msk [vmem:[#allocation2] sm:$0xff] %vm99, %v96
    // Predicated region
    $region14: #{downpool_forward.1} parent=1 // pred_check
      _
    $region15: #{downpool_forward.1} parent=1 // pred_check_branch
      %102 = sbr.rel (0) target = $region17
    $region16: #{downpool_forward.1} parent=1 // pred_region
      %s104 = ssub.s32 128, 128
      %105 = vsyncadd [#allocation3], %s104
      %s107 = sshll.u32 [#allocation2], 4
      %s108 = int_to_ptr.vmem [resolvable:$true] %s107
      %110 = dma.vmem_to_hbm [thread:$0]  %s108, 128, %s3, [#allocation3]
    $region17: #{downpool_forward.1} parent=1 // pred_fallthru
      _
    // Predicated region
    $region18: #{downpool_forward.1} parent=1 // pred_check
      _
    $region19: #{downpool_forward.1} parent=1 // pred_check_branch
      %112 = sbr.rel (0) target = $region21
    $region20: #{downpool_forward.1} parent=1 // pred_region
      %113 = dma.done [#allocation3], 128
    $region21: #{downpool_forward.1} parent=1 // pred_fallthru
      _
    %114 = vsyncpa [#allocation3], 1

</llo_original>
